<compile_context>
chip_gen: v5e
topology: v5e:2x2
jax: 0.10.0
libtpu: 0.0.40
codegen_flags: <defaults>
</compile_context>

<pallas_src>
import functools

import jax
import jax.numpy as jnp
from jax import lax
from jax.experimental import pallas as pl
from jax.experimental.pallas import tpu as pltpu


def _round_up(a, m):
    return ((a + m - 1) // m) * m


def _mlp_kernel(x_ref, w1_ref, b1_ref, w2_ref, b2_ref,
                w3_ref, b3_ref, w4_ref, b4_ref, out_ref):
    mm_dtype = w1_ref.dtype  # matmul operand dtype (bf16 default, or f32)

    # In-kernel cast of X (VPU has plenty of slack; avoids a wrapper HBM pass).
    x = x_ref[...].astype(mm_dtype)                           # (TB, in_dim)

    # fc1 + ReLU:  h1^T = relu(W1 @ X^T + b1)  -> (hidden, TB), lane-dense.
    h = lax.dot_general(w1_ref[...], x,
                        dimension_numbers=(((1,), (1,)), ((), ())),
                        preferred_element_type=jnp.float32)
    h = jnp.maximum(h + b1_ref[...], 0.0)

    # fc2 + ReLU
    h = jnp.dot(w2_ref[...], h.astype(mm_dtype),
                preferred_element_type=jnp.float32)
    h = jnp.maximum(h + b2_ref[...], 0.0)

    # fc3 + ReLU
    h = jnp.dot(w3_ref[...], h.astype(mm_dtype),
                preferred_element_type=jnp.float32)
    h = jnp.maximum(h + b3_ref[...], 0.0)

    # fc4 + tanh (constrain_out=True path) -> (out_dim, TB), lane-dense store.
    o = jnp.dot(w4_ref[...], h.astype(mm_dtype),
                preferred_element_type=jnp.float32)
    out_ref[...] = jnp.tanh(o + b4_ref[...]).astype(out_ref.dtype)


def _select_tb(batch, block_batch):
    """Batch tile: multiple of 128 (lane-dense output), >= 2 tiles when possible."""
    bb = max(128, _round_up(block_batch, 128))
    tb = min(bb, _round_up(batch, 128))
    # v7x megacore: prefer >= 2 batch tiles when there is enough work so the
    # "parallel" grid axis can use both TensorCores.
    if tb >= 256 and pl.cdiv(batch, tb) < 2:
        tb = max(128, _round_up(pl.cdiv(batch, 2), 128))
    return tb


@functools.partial(jax.jit, static_argnames=("block_batch", "matmul_dtype"))
def grader_fc_forward(x, params, *, block_batch=2048, matmul_dtype=jnp.bfloat16):
    """x: [B, ...] flattened to [B, input_dim].  params: PyTorch-layout
    W1..W4 ([out_f, in_f]) and b1..b4 ([out_f]).  Returns [B, out_dim] f32."""
    x = x.reshape(x.shape[0], -1).astype(jnp.float32)     # X.view(B, -1)
    B, input_dim = x.shape
    hidden_dim = params["W1"].shape[0]
    out_dim = params["W4"].shape[0]

    TB = _select_tb(B, block_batch)
    num_blocks = pl.cdiv(B, TB)

    # Matmul operands in matmul_dtype; biases as f32 column vectors (feat, 1).
    w1 = params["W1"].astype(matmul_dtype)
    w2 = params["W2"].astype(matmul_dtype)
    w3 = params["W3"].astype(matmul_dtype)
    w4 = params["W4"].astype(matmul_dtype)
    b1 = params["b1"].reshape(hidden_dim, 1).astype(jnp.float32)
    b2 = params["b2"].reshape(hidden_dim, 1).astype(jnp.float32)
    b3 = params["b3"].reshape(hidden_dim, 1).astype(jnp.float32)
    b4 = params["b4"].reshape(out_dim, 1).astype(jnp.float32)

    in_specs = [
        pl.BlockSpec((TB, input_dim), lambda i: (i, 0)),          # X (batch-tiled)
        pl.BlockSpec((hidden_dim, input_dim), lambda i: (0, 0)),  # W1 (resident)
        pl.BlockSpec((hidden_dim, 1), lambda i: (0, 0)),          # b1
        pl.BlockSpec((hidden_dim, hidden_dim), lambda i: (0, 0)),  # W2
        pl.BlockSpec((hidden_dim, 1), lambda i: (0, 0)),          # b2
        pl.BlockSpec((hidden_dim, hidden_dim), lambda i: (0, 0)),  # W3
        pl.BlockSpec((hidden_dim, 1), lambda i: (0, 0)),          # b3
        pl.BlockSpec((out_dim, hidden_dim), lambda i: (0, 0)),    # W4
        pl.BlockSpec((out_dim, 1), lambda i: (0, 0)),             # b4
    ]
    # Transposed, lane-dense output: (out_dim, B) tiled along lanes.
    out_spec = pl.BlockSpec((out_dim, TB), lambda i: (0, i))

    # VMEM budget: double-buffered tiles + resident params + staged activations.
    mm_isz = jnp.dtype(matmul_dtype).itemsize
    x_tile_bytes = TB * input_dim * 4
    out_tile_bytes = out_dim * TB * 4
    param_bytes = ((w1.size + w2.size + w3.size + w4.size) * mm_isz
                   + (b1.size + b2.size + b3.size + b4.size) * 4)
    act_bytes = 3 * hidden_dim * TB * 4 + 3 * hidden_dim * TB * mm_isz
    vmem_bytes = int(2 * (x_tile_bytes + out_tile_bytes)
                     + 2 * param_bytes + act_bytes + (2 << 20))
    vmem_bytes = min(max(vmem_bytes, 4 << 20), 100 << 20)

    out_t = pl.pallas_call(
        _mlp_kernel,
        out_shape=jax.ShapeDtypeStruct((out_dim, B), jnp.float32),
        grid=(num_blocks,),
        in_specs=in_specs,
        out_specs=out_spec,
        compiler_params=pltpu.CompilerParams(
            dimension_semantics=("parallel",),  # shard batch tiles across v7x TCs
            vmem_limit_bytes=vmem_bytes,
        ),
    )(x, w1, b1, w2, b2, w3, b3, w4, b4)

    # (out_dim, B) -> (B, out_dim): tiny (B*out_dim*4 bytes), fuses under jit.
    return out_t.T


def init_grader_fc_params(key, input_dim, out_dim, hidden_dim=64):
    """PyTorch-layout init mirroring nn.Linear defaults (uniform +/- 1/sqrt(fan_in)),
    with fc4.weight overridden to uniform(-0.003, 0.003) as in constrain_out=True."""
    ks = jax.random.split(key, 8)

    def linear_init(kw, kb, fan_in, fan_out):
        bound = 1.0 / jnp.sqrt(jnp.float32(fan_in))
        W = jax.random.uniform(kw, (fan_out, fan_in), jnp.float32, -bound, bound)
        b = jax.random.uniform(kb, (fan_out,), jnp.float32, -bound, bound)
        return W, b

    W1, b1 = linear_init(ks[0], ks[1], input_dim, hidden_dim)
    W2, b2 = linear_init(ks[2], ks[3], hidden_dim, hidden_dim)
    W3, b3 = linear_init(ks[4], ks[5], hidden_dim, hidden_dim)
    bound4 = 1.0 / jnp.sqrt(jnp.float32(hidden_dim))
    W4 = jax.random.uniform(ks[6], (out_dim, hidden_dim), jnp.float32, -0.003, 0.003)
    b4 = jax.random.uniform(ks[7], (out_dim,), jnp.float32, -bound4, bound4)

    return {"W1": W1, "b1": b1, "W2": W2, "b2": b2,
            "W3": W3, "b3": b3, "W4": W4, "b4": b4}


def _reference_forward(x, p):
    x = x.reshape(x.shape[0], -1)
    h1 = jnp.maximum(x @ p["W1"].T + p["b1"], 0.0)
    h2 = jnp.maximum(h1 @ p["W2"].T + p["b2"], 0.0)
    h3 = jnp.maximum(h2 @ p["W3"].T + p["b3"], 0.0)
    return jnp.tanh(h3 @ p["W4"].T + p["b4"])


if __name__ == "__main__":
    key = jax.random.PRNGKey(0)
    k_param, k_x = jax.random.split(key)

    batch = 300                 # not a multiple of the tile -> exercises ragged last block
    obs_shape = (4, 8)          # flattened input_dim = 32 (exercises X.view(B, -1))
    input_dim = obs_shape[0] * obs_shape[1]
    out_dim = 8
    hidden_dim = 64

    params = init_grader_fc_params(k_param, input_dim, out_dim, hidden_dim)
    x = jax.random.normal(k_x, (batch,) + obs_shape, dtype=jnp.float32)

    ref = _reference_forward(x, params)

    # f32 MXU path: tight check of the grid / ragged tile / transposed dataflow.
    out_f32 = jax.block_until_ready(
        grader_fc_forward(x, params, block_batch=256, matmul_dtype=jnp.float32))
    assert out_f32.shape == (batch, out_dim)
    assert jnp.allclose(out_f32, ref, atol=1e-4, rtol=1e-3), \
        float(jnp.max(jnp.abs(out_f32 - ref)))

    # Default fast path: bf16 MXU operands, f32 accumulation / epilogue.
    out_bf16 = jax.block_until_ready(grader_fc_forward(x, params))
    assert out_bf16.shape == (batch, out_dim)
    assert jnp.allclose(out_bf16, ref, atol=1e-2, rtol=5e-2), \
        float(jnp.max(jnp.abs(out_bf16 - ref)))

    print("KERNEL_OK")
</pallas_src>

<mosaic_0001>
module attributes {stable_mosaic.version = 11 : i64} {
  func.func @_mlp_kernel(%arg0: i32, %arg1: memref<256x32xf32, #tpu.memory_space<vmem>>, %arg2: memref<64x32xf32, #tpu.memory_space<vmem>>, %arg3: memref<64x1xf32, #tpu.memory_space<vmem>>, %arg4: memref<64x64xf32, #tpu.memory_space<vmem>>, %arg5: memref<64x1xf32, #tpu.memory_space<vmem>>, %arg6: memref<64x64xf32, #tpu.memory_space<vmem>>, %arg7: memref<64x1xf32, #tpu.memory_space<vmem>>, %arg8: memref<8x64xf32, #tpu.memory_space<vmem>>, %arg9: memref<8x1xf32, #tpu.memory_space<vmem>>, %arg10: memref<8x256xf32, #tpu.memory_space<vmem>>) attributes {dimension_semantics = [#tpu.dimension_semantics<parallel>], iteration_bounds = array<i64: 2>, scalar_prefetch = 0 : i64, scratch_operands = 0 : i64, tpu.core_type = #tpu.core_type<tc>, window_params = [{transform_indices = @transform_0, window_bounds = array<i64: 256, 32>}, {pipeline_mode = #tpu.pipeline_mode<synchronous>, transform_indices = @transform_1, window_bounds = array<i64: 64, 32>}, {pipeline_mode = #tpu.pipeline_mode<synchronous>, transform_indices = @transform_2, window_bounds = array<i64: 64, 1>}, {pipeline_mode = #tpu.pipeline_mode<synchronous>, transform_indices = @transform_3, window_bounds = array<i64: 64, 64>}, {pipeline_mode = #tpu.pipeline_mode<synchronous>, transform_indices = @transform_4, window_bounds = array<i64: 64, 1>}, {pipeline_mode = #tpu.pipeline_mode<synchronous>, transform_indices = @transform_5, window_bounds = array<i64: 64, 64>}, {pipeline_mode = #tpu.pipeline_mode<synchronous>, transform_indices = @transform_6, window_bounds = array<i64: 64, 1>}, {pipeline_mode = #tpu.pipeline_mode<synchronous>, transform_indices = @transform_7, window_bounds = array<i64: 8, 64>}, {pipeline_mode = #tpu.pipeline_mode<synchronous>, transform_indices = @transform_8, window_bounds = array<i64: 8, 1>}, {transform_indices = @transform_9, window_bounds = array<i64: 8, 256>}]} {
    %c0 = arith.constant 0 : index
    %c0_0 = arith.constant 0 : index
    %0 = vector.load %arg1[%c0, %c0_0] : memref<256x32xf32, #tpu.memory_space<vmem>>, vector<256x32xf32>
    %c0_1 = arith.constant 0 : index
    %c0_2 = arith.constant 0 : index
    %1 = vector.load %arg2[%c0_1, %c0_2] : memref<64x32xf32, #tpu.memory_space<vmem>>, vector<64x32xf32>
    %cst = arith.constant dense<0.000000e+00> : vector<64x256xf32>
    %2 = tpu.matmul %1, %0, %cst {dimension_numbers = #tpu.dot_dimension_numbers<[1], [1], [0], [0], [0, 0, 1, 0], [], []>} : vector<64x32xf32>, vector<256x32xf32>, vector<64x256xf32> -> vector<64x256xf32>
    %c0_3 = arith.constant 0 : index
    %c0_4 = arith.constant 0 : index
    %3 = vector.load %arg3[%c0_3, %c0_4] : memref<64x1xf32, #tpu.memory_space<vmem>>, vector<64x1xf32>
    %4 = vector.broadcast %3 : vector<64x1xf32> to vector<64x256xf32>
    %5 = arith.addf %2, %4 : vector<64x256xf32>
    %cst_5 = arith.constant 0.000000e+00 : f32
    %6 = vector.broadcast %cst_5 : f32 to vector<64x256xf32>
    %7 = arith.maximumf %5, %6 : vector<64x256xf32>
    %c0_6 = arith.constant 0 : index
    %c0_7 = arith.constant 0 : index
    %8 = vector.load %arg4[%c0_6, %c0_7] : memref<64x64xf32, #tpu.memory_space<vmem>>, vector<64x64xf32>
    %cst_8 = arith.constant dense<0.000000e+00> : vector<64x256xf32>
    %9 = tpu.matmul %8, %7, %cst_8 {dimension_numbers = #tpu.dot_dimension_numbers<[1], [0], [0], [1], [0, 0, 1, 1], [], []>} : vector<64x64xf32>, vector<64x256xf32>, vector<64x256xf32> -> vector<64x256xf32>
    %c0_9 = arith.constant 0 : index
    %c0_10 = arith.constant 0 : index
    %10 = vector.load %arg5[%c0_9, %c0_10] : memref<64x1xf32, #tpu.memory_space<vmem>>, vector<64x1xf32>
    %11 = vector.broadcast %10 : vector<64x1xf32> to vector<64x256xf32>
    %12 = arith.addf %9, %11 : vector<64x256xf32>
    %cst_11 = arith.constant 0.000000e+00 : f32
    %13 = vector.broadcast %cst_11 : f32 to vector<64x256xf32>
    %14 = arith.maximumf %12, %13 : vector<64x256xf32>
    %c0_12 = arith.constant 0 : index
    %c0_13 = arith.constant 0 : index
    %15 = vector.load %arg6[%c0_12, %c0_13] : memref<64x64xf32, #tpu.memory_space<vmem>>, vector<64x64xf32>
    %cst_14 = arith.constant dense<0.000000e+00> : vector<64x256xf32>
    %16 = tpu.matmul %15, %14, %cst_14 {dimension_numbers = #tpu.dot_dimension_numbers<[1], [0], [0], [1], [0, 0, 1, 1], [], []>} : vector<64x64xf32>, vector<64x256xf32>, vector<64x256xf32> -> vector<64x256xf32>
    %c0_15 = arith.constant 0 : index
    %c0_16 = arith.constant 0 : index
    %17 = vector.load %arg7[%c0_15, %c0_16] : memref<64x1xf32, #tpu.memory_space<vmem>>, vector<64x1xf32>
    %18 = vector.broadcast %17 : vector<64x1xf32> to vector<64x256xf32>
    %19 = arith.addf %16, %18 : vector<64x256xf32>
    %cst_17 = arith.constant 0.000000e+00 : f32
    %20 = vector.broadcast %cst_17 : f32 to vector<64x256xf32>
    %21 = arith.maximumf %19, %20 : vector<64x256xf32>
    %c0_18 = arith.constant 0 : index
    %c0_19 = arith.constant 0 : index
    %22 = vector.load %arg8[%c0_18, %c0_19] : memref<8x64xf32, #tpu.memory_space<vmem>>, vector<8x64xf32>
    %cst_20 = arith.constant dense<0.000000e+00> : vector<8x256xf32>
    %23 = tpu.matmul %22, %21, %cst_20 {dimension_numbers = #tpu.dot_dimension_numbers<[1], [0], [0], [1], [0, 0, 1, 1], [], []>} : vector<8x64xf32>, vector<64x256xf32>, vector<8x256xf32> -> vector<8x256xf32>
    %c0_21 = arith.constant 0 : index
    %c0_22 = arith.constant 0 : index
    %24 = vector.load %arg9[%c0_21, %c0_22] : memref<8x1xf32, #tpu.memory_space<vmem>>, vector<8x1xf32>
    %25 = vector.broadcast %24 : vector<8x1xf32> to vector<8x256xf32>
    %26 = arith.addf %23, %25 : vector<8x256xf32>
    %27 = math.tanh %26 : vector<8x256xf32>
    %c0_23 = arith.constant 0 : index
    %c0_24 = arith.constant 0 : index
    %28 = vector.load %arg10[%c0_23, %c0_24] : memref<8x256xf32, #tpu.memory_space<vmem>>, vector<8x256xf32>
    tpu.vector_store %arg10[%c0_23, %c0_24], %27 {strides = array<i32>} : memref<8x256xf32, #tpu.memory_space<vmem>>, vector<8x256xf32>,
    return
  }
  func.func @transform_0(%arg0: i32) -> (i32, i32) {
    %c0_i32 = arith.constant 0 : i32
    %c0_i32_0 = arith.constant 0 : i32
    return %arg0, %c0_i32 : i32, i32
  }
  func.func @transform_1(%arg0: i32) -> (i32, i32) {
    %c0_i32 = arith.constant 0 : i32
    %c0_i32_0 = arith.constant 0 : i32
    %c0_i32_1 = arith.constant 0 : i32
    return %c0_i32, %c0_i32_0 : i32, i32
  }
  func.func @transform_2(%arg0: i32) -> (i32, i32) {
    %c0_i32 = arith.constant 0 : i32
    %c0_i32_0 = arith.constant 0 : i32
    %c0_i32_1 = arith.constant 0 : i32
    return %c0_i32, %c0_i32_0 : i32, i32
  }
  func.func @transform_3(%arg0: i32) -> (i32, i32) {
    %c0_i32 = arith.constant 0 : i32
    %c0_i32_0 = arith.constant 0 : i32
    %c0_i32_1 = arith.constant 0 : i32
    return %c0_i32, %c0_i32_0 : i32, i32
  }
  func.func @transform_4(%arg0: i32) -> (i32, i32) {
    %c0_i32 = arith.constant 0 : i32
    %c0_i32_0 = arith.constant 0 : i32
    %c0_i32_1 = arith.constant 0 : i32
    return %c0_i32, %c0_i32_0 : i32, i32
  }
  func.func @transform_5(%arg0: i32) -> (i32, i32) {
    %c0_i32 = arith.constant 0 : i32
    %c0_i32_0 = arith.constant 0 : i32
    %c0_i32_1 = arith.constant 0 : i32
    return %c0_i32, %c0_i32_0 : i32, i32
  }
  func.func @transform_6(%arg0: i32) -> (i32, i32) {
    %c0_i32 = arith.constant 0 : i32
    %c0_i32_0 = arith.constant 0 : i32
    %c0_i32_1 = arith.constant 0 : i32
    return %c0_i32, %c0_i32_0 : i32, i32
  }
  func.func @transform_7(%arg0: i32) -> (i32, i32) {
    %c0_i32 = arith.constant 0 : i32
    %c0_i32_0 = arith.constant 0 : i32
    %c0_i32_1 = arith.constant 0 : i32
    return %c0_i32, %c0_i32_0 : i32, i32
  }
  func.func @transform_8(%arg0: i32) -> (i32, i32) {
    %c0_i32 = arith.constant 0 : i32
    %c0_i32_0 = arith.constant 0 : i32
    %c0_i32_1 = arith.constant 0 : i32
    return %c0_i32, %c0_i32_0 : i32, i32
  }
  func.func @transform_9(%arg0: i32) -> (i32, i32) {
    %c0_i32 = arith.constant 0 : i32
    %c0_i32_0 = arith.constant 0 : i32
    return %c0_i32, %arg0 : i32, i32
  }
}

</mosaic_0001>

<llo_original>
// kernel: grader_fc_forward.1
$region0: #{grader_fc_forward.1}
  #allocation0 [shape = 'u32[]', space=smem, size = 0x4, offset = 0x4, fixed_abs, tag = 'smem constant byte address 0x4 - core index']
  #allocation1 [shape = 'u32[72,128]{1,0:T(1,128)}', space=vmem, size = 0x9000, scoped, tag = 'internal scratch']
  %s0 = inlined_call_operand.vmem [shape: f32[300,32], index: 0, kind: input, shape index: {}]
  %s1 = inlined_call_operand.vmem [shape: f32[64,32], index: 1, kind: input, shape index: {}]
  %s2 = inlined_call_operand.vmem [shape: f32[64,1], index: 2, kind: input, shape index: {}]
  %s3 = inlined_call_operand.vmem [shape: f32[64,64], index: 3, kind: input, shape index: {}]
  %s4 = inlined_call_operand.vmem [shape: f32[64,1], index: 4, kind: input, shape index: {}]
  %s5 = inlined_call_operand.vmem [shape: f32[64,64], index: 5, kind: input, shape index: {}]
  %s6 = inlined_call_operand.vmem [shape: f32[64,1], index: 6, kind: input, shape index: {}]
  %s7 = inlined_call_operand.vmem [shape: f32[8,64], index: 7, kind: input, shape index: {}]
  %s8 = inlined_call_operand.vmem [shape: f32[8,1], index: 8, kind: input, shape index: {}]
  %s9 = inlined_call_operand.hbm [shape: f32[8,300], index: 9, kind: output, shape index: {}]
  %s10 = sld [smem:[#allocation0]]
  $region69: #{grader_fc_forward.1} parent=0
    _
  %s12 = ssub.s32 1, %s10
  %s13 = scalar_select 0, %s12, %s10
  $region1: #{grader_fc_forward.1} parent=0
    #allocation2 [shape = 'u8[16384]{0}', space=vmem, size = 0x4000, scoped, tag = 'output window, operand 0']
    #allocation3 [shape = 's32[2]{0}', space=sflag, size = 0x8, scoped, tag = 'scoped memory for grader_fc_forward.1']
    %14 = vsyncpa [#allocation3], 0
    %s15 = scalar_lea.sflag [#allocation3], 1
    %16 = vsyncpa %s15, 0
    loop: start=0, step=1, limit=4
    $region2: #{grader_fc_forward.1} parent=1 // loop_pre_header
      _
    $region3: #{grader_fc_forward.1} parent=1 // loop_header
      %s18 = sphi 0, %s22
      %p19 = scmp.ge.s32.totalorder %s18, 4
      %s28 = sphi 0, %s30
      %s31 = sphi 0, %s28
      %s32 = sphi 0, %s31
      %s48 = sphi 0, %s32
      %s52 = sphi 0, %s52
      %s54 = sphi 0, %s52
      %s55 = sphi 0, %s54
      %s69 = sphi 0, %s55
      %s73 = sphi 0, %s73
      %s75 = sphi 0, %s73
      %s76 = sphi 0, %s75
      %s90 = sphi 0, %s76
      %s94 = sphi 0, %s94
      %s96 = sphi 0, %s94
      %s97 = sphi 0, %s96
      %s111 = sphi 0, %s97
      %s115 = sphi 0, %s115
      %s117 = sphi 0, %s115
      %s118 = sphi 0, %s117
      %s132 = sphi 0, %s118
      %s136 = sphi 0, %s136
      %s138 = sphi 0, %s136
      %s139 = sphi 0, %s138
      %s153 = sphi 0, %s139
      %s157 = sphi 0, %s157
      %s159 = sphi 0, %s157
      %s160 = sphi 0, %s159
      %s174 = sphi 0, %s160
      %s178 = sphi 0, %s178
      %s180 = sphi 0, %s178
      %s181 = sphi 0, %s180
      %s195 = sphi 0, %s181
      %s199 = sphi 0, %s199
      %s201 = sphi 0, %s199
      %s202 = sphi 0, %s201
      %s216 = sphi 0, %s202
      %s222 = sphi 0, %s224
      %s225 = sphi 0, %s222
      %s226 = sphi 0, %s225
      %s242 = sphi 0, %s226
    $region4: #{grader_fc_forward.1} parent=1 // loop_header_branch
      %21 = sbr.rel (%p19) target = $region8
    $region5: #{grader_fc_forward.1} parent=1 // loop_body
      %s23 = ssub.s32 %s18, 1
      %s24 = ssub.s32 %s18, 2
      %s25 = sadd.s32 %s18, 1
      %s26 = ssub.s32 %s18, %s25
      %p27 = scmp.eq.s32.totalorder %s26, 0
      %s29 = sadd.s32 %s28, 1
      %s30 = scalar_select %p27, %s28, %s29
      %p33 = pneg %p27
      %p34 = scmp.eq.s32.totalorder %s18, 1
      %p35 = por %p33, %p34
      %p36 = scmp.ne.s32.totalorder %s28, %s31
      %p37 = scmp.eq.s32.totalorder %s18, 0
      %p38 = por %p36, %p37
      %p39 = scmp.ne.s32.totalorder %s28, %s31
      %p40 = scmp.eq.s32.totalorder %s23, 1
      %p41 = por %p39, %p40
      %p42 = scmp.ne.s32.totalorder %s31, %s32
      %p43 = scmp.eq.s32.totalorder %s23, 0
      %p44 = por %p42, %p43
      %p45 = scmp.ne.s32.totalorder %s31, %s32
      %p46 = scmp.eq.s32.totalorder %s24, 1
      %p47 = por %p45, %p46
      %p49 = scmp.ne.s32.totalorder %s32, %s48
      %p50 = scmp.eq.s32.totalorder %s24, 0
      %p51 = por %p49, %p50
      %s53 = sadd.s32 %s52, 1
      %p56 = scmp.eq.s32.totalorder %s18, 1
      %p57 = scmp.ne.s32.totalorder %s52, %s54
      %p58 = scmp.eq.s32.totalorder %s18, 0
      %p59 = por %p57, %p58
      %p60 = scmp.ne.s32.totalorder %s52, %s54
      %p61 = scmp.eq.s32.totalorder %s23, 1
      %p62 = por %p60, %p61
      %p63 = scmp.ne.s32.totalorder %s54, %s55
      %p64 = scmp.eq.s32.totalorder %s23, 0
      %p65 = por %p63, %p64
      %p66 = scmp.ne.s32.totalorder %s54, %s55
      %p67 = scmp.eq.s32.totalorder %s24, 1
      %p68 = por %p66, %p67
      %p70 = scmp.ne.s32.totalorder %s55, %s69
      %p71 = scmp.eq.s32.totalorder %s24, 0
      %p72 = por %p70, %p71
      %s74 = sadd.s32 %s73, 1
      %p77 = scmp.eq.s32.totalorder %s18, 1
      %p78 = scmp.ne.s32.totalorder %s73, %s75
      %p79 = scmp.eq.s32.totalorder %s18, 0
      %p80 = por %p78, %p79
      %p81 = scmp.ne.s32.totalorder %s73, %s75
      %p82 = scmp.eq.s32.totalorder %s23, 1
      %p83 = por %p81, %p82
      %p84 = scmp.ne.s32.totalorder %s75, %s76
      %p85 = scmp.eq.s32.totalorder %s23, 0
      %p86 = por %p84, %p85
      %p87 = scmp.ne.s32.totalorder %s75, %s76
      %p88 = scmp.eq.s32.totalorder %s24, 1
      %p89 = por %p87, %p88
      %p91 = scmp.ne.s32.totalorder %s76, %s90
      %p92 = scmp.eq.s32.totalorder %s24, 0
      %p93 = por %p91, %p92
      %s95 = sadd.s32 %s94, 1
      %p98 = scmp.eq.s32.totalorder %s18, 1
      %p99 = scmp.ne.s32.totalorder %s94, %s96
      %p100 = scmp.eq.s32.totalorder %s18, 0
      %p101 = por %p99, %p100
      %p102 = scmp.ne.s32.totalorder %s94, %s96
      %p103 = scmp.eq.s32.totalorder %s23, 1
      %p104 = por %p102, %p103
      %p105 = scmp.ne.s32.totalorder %s96, %s97
      %p106 = scmp.eq.s32.totalorder %s23, 0
      %p107 = por %p105, %p106
      %p108 = scmp.ne.s32.totalorder %s96, %s97
      %p109 = scmp.eq.s32.totalorder %s24, 1
      %p110 = por %p108, %p109
      %p112 = scmp.ne.s32.totalorder %s97, %s111
      %p113 = scmp.eq.s32.totalorder %s24, 0
      %p114 = por %p112, %p113
      %s116 = sadd.s32 %s115, 1
      %p119 = scmp.eq.s32.totalorder %s18, 1
      %p120 = scmp.ne.s32.totalorder %s115, %s117
      %p121 = scmp.eq.s32.totalorder %s18, 0
      %p122 = por %p120, %p121
      %p123 = scmp.ne.s32.totalorder %s115, %s117
      %p124 = scmp.eq.s32.totalorder %s23, 1
      %p125 = por %p123, %p124
      %p126 = scmp.ne.s32.totalorder %s117, %s118
      %p127 = scmp.eq.s32.totalorder %s23, 0
      %p128 = por %p126, %p127
      %p129 = scmp.ne.s32.totalorder %s117, %s118
      %p130 = scmp.eq.s32.totalorder %s24, 1
      %p131 = por %p129, %p130
      %p133 = scmp.ne.s32.totalorder %s118, %s132
      %p134 = scmp.eq.s32.totalorder %s24, 0
      %p135 = por %p133, %p134
      %s137 = sadd.s32 %s136, 1
      %p140 = scmp.eq.s32.totalorder %s18, 1
      %p141 = scmp.ne.s32.totalorder %s136, %s138
      %p142 = scmp.eq.s32.totalorder %s18, 0
      %p143 = por %p141, %p142
      %p144 = scmp.ne.s32.totalorder %s136, %s138
      %p145 = scmp.eq.s32.totalorder %s23, 1
      %p146 = por %p144, %p145
      %p147 = scmp.ne.s32.totalorder %s138, %s139
      %p148 = scmp.eq.s32.totalorder %s23, 0
      %p149 = por %p147, %p148
      %p150 = scmp.ne.s32.totalorder %s138, %s139
      %p151 = scmp.eq.s32.totalorder %s24, 1
      %p152 = por %p150, %p151
      %p154 = scmp.ne.s32.totalorder %s139, %s153
      %p155 = scmp.eq.s32.totalorder %s24, 0
      %p156 = por %p154, %p155
      %s158 = sadd.s32 %s157, 1
      %p161 = scmp.eq.s32.totalorder %s18, 1
      %p162 = scmp.ne.s32.totalorder %s157, %s159
      %p163 = scmp.eq.s32.totalorder %s18, 0
      %p164 = por %p162, %p163
      %p165 = scmp.ne.s32.totalorder %s157, %s159
      %p166 = scmp.eq.s32.totalorder %s23, 1
      %p167 = por %p165, %p166
      %p168 = scmp.ne.s32.totalorder %s159, %s160
      %p169 = scmp.eq.s32.totalorder %s23, 0
      %p170 = por %p168, %p169
      %p171 = scmp.ne.s32.totalorder %s159, %s160
      %p172 = scmp.eq.s32.totalorder %s24, 1
      %p173 = por %p171, %p172
      %p175 = scmp.ne.s32.totalorder %s160, %s174
      %p176 = scmp.eq.s32.totalorder %s24, 0
      %p177 = por %p175, %p176
      %s179 = sadd.s32 %s178, 1
      %p182 = scmp.eq.s32.totalorder %s18, 1
      %p183 = scmp.ne.s32.totalorder %s178, %s180
      %p184 = scmp.eq.s32.totalorder %s18, 0
      %p185 = por %p183, %p184
      %p186 = scmp.ne.s32.totalorder %s178, %s180
      %p187 = scmp.eq.s32.totalorder %s23, 1
      %p188 = por %p186, %p187
      %p189 = scmp.ne.s32.totalorder %s180, %s181
      %p190 = scmp.eq.s32.totalorder %s23, 0
      %p191 = por %p189, %p190
      %p192 = scmp.ne.s32.totalorder %s180, %s181
      %p193 = scmp.eq.s32.totalorder %s24, 1
      %p194 = por %p192, %p193
      %p196 = scmp.ne.s32.totalorder %s181, %s195
      %p197 = scmp.eq.s32.totalorder %s24, 0
      %p198 = por %p196, %p197
      %s200 = sadd.s32 %s199, 1
      %p203 = scmp.eq.s32.totalorder %s18, 1
      %p204 = scmp.ne.s32.totalorder %s199, %s201
      %p205 = scmp.eq.s32.totalorder %s18, 0
      %p206 = por %p204, %p205
      %p207 = scmp.ne.s32.totalorder %s199, %s201
      %p208 = scmp.eq.s32.totalorder %s23, 1
      %p209 = por %p207, %p208
      %p210 = scmp.ne.s32.totalorder %s201, %s202
      %p211 = scmp.eq.s32.totalorder %s23, 0
      %p212 = por %p210, %p211
      %p213 = scmp.ne.s32.totalorder %s201, %s202
      %p214 = scmp.eq.s32.totalorder %s24, 1
      %p215 = por %p213, %p214
      %p217 = scmp.ne.s32.totalorder %s202, %s216
      %p218 = scmp.eq.s32.totalorder %s24, 0
      %p219 = por %p217, %p218
      %s220 = ssub.s32 %s18, %s25
      %p221 = scmp.eq.s32.totalorder %s220, 0
      %s223 = sadd.s32 %s222, 1
      %s224 = scalar_select %p221, %s222, %s223
      %p227 = pneg %p221
      %p228 = scmp.eq.s32.totalorder %s18, 1
      %p229 = por %p227, %p228
      %p230 = scmp.ne.s32.totalorder %s222, %s225
      %p231 = scmp.eq.s32.totalorder %s18, 0
      %p232 = por %p230, %p231
      %p233 = scmp.ne.s32.totalorder %s222, %s225
      %p234 = scmp.eq.s32.totalorder %s23, 1
      %p235 = por %p233, %p234
      %p236 = scmp.ne.s32.totalorder %s225, %s226
      %p237 = scmp.eq.s32.totalorder %s23, 0
      %p238 = por %p236, %p237
      %p239 = scmp.ne.s32.totalorder %s225, %s226
      %p240 = scmp.eq.s32.totalorder %s24, 1
      %p241 = por %p239, %p240
      %p243 = scmp.ne.s32.totalorder %s226, %s242
      %p244 = scmp.eq.s32.totalorder %s24, 0
      %p245 = por %p243, %p244
      %p246 = scmp.le.s32.totalorder 1, %s18
      %p247 = scmp.lt.s32.totalorder %s18, 3
      %p248 = pnand %p246, %p247
      %p249 = pneg %p248
      // Predicated region
      $region9: #{grader_fc_forward.1} parent=5 // pred_check
        _
      $region10: #{grader_fc_forward.1} parent=5 // pred_check_branch
        %251 = sbr.rel (%p248) target = $region12
      $region11: #{grader_fc_forward.1} parent=5 // pred_region
        %s252 = ssub.s32 %s18, 1
        // Predicated region
        $region13: #{grader_fc_forward.1} parent=11 // pred_check
          %p253 = pneg %p65
        $region14: #{grader_fc_forward.1} parent=11 // pred_check_branch
          %255 = sbr.rel (%p253) target = $region16
        $region15: #{grader_fc_forward.1} parent=11 // pred_region
          _
        $region16: #{grader_fc_forward.1} parent=11 // pred_fallthru
          _
        // Predicated region
        $region17: #{grader_fc_forward.1} parent=11 // pred_check
          %p256 = pneg %p86
        $region18: #{grader_fc_forward.1} parent=11 // pred_check_branch
          %258 = sbr.rel (%p256) target = $region20
        $region19: #{grader_fc_forward.1} parent=11 // pred_region
          _
        $region20: #{grader_fc_forward.1} parent=11 // pred_fallthru
          _
        // Predicated region
        $region21: #{grader_fc_forward.1} parent=11 // pred_check
          %p259 = pneg %p107
        $region22: #{grader_fc_forward.1} parent=11 // pred_check_branch
          %261 = sbr.rel (%p259) target = $region24
        $region23: #{grader_fc_forward.1} parent=11 // pred_region
          _
        $region24: #{grader_fc_forward.1} parent=11 // pred_fallthru
          _
        // Predicated region
        $region25: #{grader_fc_forward.1} parent=11 // pred_check
          %p262 = pneg %p128
        $region26: #{grader_fc_forward.1} parent=11 // pred_check_branch
          %264 = sbr.rel (%p262) target = $region28
        $region27: #{grader_fc_forward.1} parent=11 // pred_region
          _
        $region28: #{grader_fc_forward.1} parent=11 // pred_fallthru
          _
        // Predicated region
        $region29: #{grader_fc_forward.1} parent=11 // pred_check
          %p265 = pneg %p149
        $region30: #{grader_fc_forward.1} parent=11 // pred_check_branch
          %267 = sbr.rel (%p265) target = $region32
        $region31: #{grader_fc_forward.1} parent=11 // pred_region
          _
        $region32: #{grader_fc_forward.1} parent=11 // pred_fallthru
          _
        // Predicated region
        $region33: #{grader_fc_forward.1} parent=11 // pred_check
          %p268 = pneg %p170
        $region34: #{grader_fc_forward.1} parent=11 // pred_check_branch
          %270 = sbr.rel (%p268) target = $region36
        $region35: #{grader_fc_forward.1} parent=11 // pred_region
          _
        $region36: #{grader_fc_forward.1} parent=11 // pred_fallthru
          _
        // Predicated region
        $region37: #{grader_fc_forward.1} parent=11 // pred_check
          %p271 = pneg %p191
        $region38: #{grader_fc_forward.1} parent=11 // pred_check_branch
          %273 = sbr.rel (%p271) target = $region40
        $region39: #{grader_fc_forward.1} parent=11 // pred_region
          _
        $region40: #{grader_fc_forward.1} parent=11 // pred_fallthru
          _
        // Predicated region
        $region41: #{grader_fc_forward.1} parent=11 // pred_check
          %p274 = pneg %p212
        $region42: #{grader_fc_forward.1} parent=11 // pred_check_branch
          %276 = sbr.rel (%p274) target = $region44
        $region43: #{grader_fc_forward.1} parent=11 // pred_region
          _
        $region44: #{grader_fc_forward.1} parent=11 // pred_fallthru
          _
      $region12: #{grader_fc_forward.1} parent=5 // pred_fallthru
        _
      %p277 = scmp.lt.s32.totalorder %s18, 2
      // Predicated region
      $region45: #{grader_fc_forward.1} parent=5 // pred_check
        %p278 = pneg %p277
      $region46: #{grader_fc_forward.1} parent=5 // pred_check_branch
        %280 = sbr.rel (%p278) target = $region48
      $region47: #{grader_fc_forward.1} parent=5 // pred_region
        // Predicated region
        $region49: #{grader_fc_forward.1} parent=47 // pred_check
          %p281 = pneg %p38
        $region50: #{grader_fc_forward.1} parent=47 // pred_check_branch
          %283 = sbr.rel (%p281) target = $region52
        $region51: #{grader_fc_forward.1} parent=47 // pred_region
          %s284 = smul.u32 32, %s18
          %s285 = ssub.s32 38, %s284
          %p286 = scmp.lt.s32.totalorder %s285, 32
          %s287 = scalar_select %p286, %s285, 32
          %s288 = smul.u32 8, %s287
          %p289 = scmp.lt.s32.totalorder %s284, 37
          %s290 = scalar_select %p289, %s284, 37
          %s291 = smul.addr %s290, 8
          %s292 = scalar_lea.vmem %s0, %s291
          %s293 = smul.u32 32, %s18
          %s294 = ssub.s32 38, %s293
          %p295 = scmp.lt.s32.totalorder %s294, 32
          %s296 = scalar_select %p295, %s294, 32
          %s297 = smul.u32 8, %s296
        $region52: #{grader_fc_forward.1} parent=47 // pred_fallthru
          _
      $region48: #{grader_fc_forward.1} parent=5 // pred_fallthru
        _
      %p298 = scmp.le.s32.totalorder 1, %s18
      %p299 = scmp.lt.s32.totalorder %s18, 3
      %p300 = pnand %p298, %p299
      %p301 = pneg %p300
      // Predicated region
      $region53: #{grader_fc_forward.1} parent=5 // pred_check
        _
      $region54: #{grader_fc_forward.1} parent=5 // pred_check_branch
        %303 = sbr.rel (%p300) target = $region56
      $region55: #{grader_fc_forward.1} parent=5 // pred_region
        %s304 = ssub.s32 %s18, 1
        %s305 = smul.u32 32, %s23
        %s306 = ssub.s32 38, %s305
        %p307 = scmp.lt.s32.totalorder %s306, 32
        %s308 = scalar_select %p307, %s306, 32
        %s309 = smul.u32 8, %s308
        %p310 = scmp.lt.s32.totalorder %s305, 37
        %s311 = scalar_select %p310, %s305, 37
        %s312 = smul.addr %s311, 8
        %s313 = scalar_lea.vmem %s0, %s312
        %p314 = pneg %p44
        %p315 = pneg %p41
        %p316 = pneg %p65
        %p317 = pneg %p62
        %p318 = pneg %p86
        %p319 = pneg %p83
        %p320 = pneg %p107
        %p321 = pneg %p104
        %p322 = pneg %p128
        %p323 = pneg %p125
        %p324 = pneg %p149
        %p325 = pneg %p146
        %p326 = pneg %p170
        %p327 = pneg %p167
        %p328 = pneg %p191
        %p329 = pneg %p188
        %p330 = pneg %p212
        %p331 = pneg %p209
        %p332 = pneg %p238
        %p333 = pneg %p235
        %s334 = sand.u32 %s225, 1
        %s335 = scalar_lea.sflag [#allocation3], %s334
        %s336 = sand.u32 %s225, 1
        %s337 = smul.addr %s336, 16
        %s338 = scalar_lea.vmem [#allocation2], %s337
        %s339 = smul.u32 32, %s23
        %s340 = ssub.s32 38, %s339
        %p341 = scmp.lt.s32.totalorder %s340, 32
        %s342 = scalar_select %p341, %s340, 32
        %s343 = smul.u32 8, %s342
        %p344 = scmp.lt.s32.totalorder %s339, 37
        %s345 = scalar_select %p344, %s339, 37
        %s346 = smul.addr %s345, 8
        %s347 = scalar_lea.vmem %s0, %s346
        %s348 = smul.u32 32, %s23
        %s349 = ssub.s32 38, %s348
        %p350 = scmp.lt.s32.totalorder %s349, 32
        %s351 = scalar_select %p350, %s349, 32
        %s352 = smul.u32 8, %s351
        %s353 = smul.u32 2, %s23
        %s354 = ssub.s32 3, %s353
        %p355 = scmp.lt.s32.totalorder %s354, 2
        %s356 = scalar_select %p355, %s354, 2
        %s357 = smul.u32 8, %s356
        %v358 = vld [vmem:[%s347] sm:$0xff]
        %v359 = vld [vmem:[%s347 + $0x8] sm:$0xff]
        %v360 = vld [vmem:[%s347 + $0x10] sm:$0xff]
        %v361 = vld [vmem:[%s347 + $0x18] sm:$0xff]
        %v362 = vld [vmem:[%s347 + $0x20] sm:$0xff]
        %v363 = vld [vmem:[%s347 + $0x28] sm:$0xff]
        %v364 = vld [vmem:[%s347 + $0x30] sm:$0xff]
        %v365 = vld [vmem:[%s347 + $0x38] sm:$0xff]
        %v366 = vld [vmem:[%s347 + $0x40] sm:$0xff]
        %v367 = vld [vmem:[%s347 + $0x48] sm:$0xff]
        %v368 = vld [vmem:[%s347 + $0x50] sm:$0xff]
        %v369 = vld [vmem:[%s347 + $0x58] sm:$0xff]
        %v370 = vld [vmem:[%s347 + $0x60] sm:$0xff]
        %v371 = vld [vmem:[%s347 + $0x68] sm:$0xff]
        %v372 = vld [vmem:[%s347 + $0x70] sm:$0xff]
        %v373 = vld [vmem:[%s347 + $0x78] sm:$0xff]
        %v374 = vld [vmem:[%s347 + $0x80] sm:$0xff]
        %v375 = vld [vmem:[%s347 + $0x88] sm:$0xff]
        %v376 = vld [vmem:[%s347 + $0x90] sm:$0xff]
        %v377 = vld [vmem:[%s347 + $0x98] sm:$0xff]
        %v378 = vld [vmem:[%s347 + $0xa0] sm:$0xff]
        %v379 = vld [vmem:[%s347 + $0xa8] sm:$0xff]
        %v380 = vld [vmem:[%s347 + $0xb0] sm:$0xff]
        %v381 = vld [vmem:[%s347 + $0xb8] sm:$0xff]
        %v382 = vld [vmem:[%s347 + $0xc0] sm:$0xff]
        %v383 = vld [vmem:[%s347 + $0xc8] sm:$0xff]
        %v384 = vld [vmem:[%s347 + $0xd0] sm:$0xff]
        %v385 = vld [vmem:[%s347 + $0xd8] sm:$0xff]
        %v386 = vld [vmem:[%s347 + $0xe0] sm:$0xff]
        %v387 = vld [vmem:[%s347 + $0xe8] sm:$0xff]
        %v388 = vld [vmem:[%s347 + $0xf0] sm:$0xff]
        %v389 = vld [vmem:[%s347 + $0xf8] sm:$0xff]
        %v390 = vld [vmem:[%s1] sm:$0xff]
        %v391 = vld [vmem:[%s1 + $0x8] sm:$0xff]
        %v392 = vld [vmem:[%s1 + $0x10] sm:$0xff]
        %v393 = vld [vmem:[%s1 + $0x18] sm:$0xff]
        %v394 = vld [vmem:[%s1 + $0x20] sm:$0xff]
        %v395 = vld [vmem:[%s1 + $0x28] sm:$0xff]
        %v396 = vld [vmem:[%s1 + $0x30] sm:$0xff]
        %v397 = vld [vmem:[%s1 + $0x38] sm:$0xff]
        %v398 = vld [vmem:[%s2] sm:$0xff]
        %v399 = vld [vmem:[%s2 + $0x8] sm:$0xff]
        %v400 = vld [vmem:[%s2 + $0x10] sm:$0xff]
        %v401 = vld [vmem:[%s2 + $0x18] sm:$0xff]
        %v402 = vld [vmem:[%s2 + $0x20] sm:$0xff]
        %v403 = vld [vmem:[%s2 + $0x28] sm:$0xff]
        %v404 = vld [vmem:[%s2 + $0x30] sm:$0xff]
        %v405 = vld [vmem:[%s2 + $0x38] sm:$0xff]
        %407 = vset.pattern.permute.xlu0 0
        %408 = vperm.xlu0 %407, %v398
        %v409 = vpop.permute.xlu0 %408
        %412 = vset.pattern.permute.xlu0 0
        %413 = vperm.xlu0 %412, %v399
        %v414 = vpop.permute.xlu0 %413
        %417 = vset.pattern.permute.xlu0 0
        %418 = vperm.xlu0 %417, %v400
        %v419 = vpop.permute.xlu0 %418
        %422 = vset.pattern.permute.xlu0 0
        %423 = vperm.xlu0 %422, %v401
        %v424 = vpop.permute.xlu0 %423
        %427 = vset.pattern.permute.xlu0 0
        %428 = vperm.xlu0 %427, %v402
        %v429 = vpop.permute.xlu0 %428
        %432 = vset.pattern.permute.xlu0 0
        %433 = vperm.xlu0 %432, %v403
        %v434 = vpop.permute.xlu0 %433
        %437 = vset.pattern.permute.xlu0 0
        %438 = vperm.xlu0 %437, %v404
        %v439 = vpop.permute.xlu0 %438
        %442 = vset.pattern.permute.xlu0 0
        %443 = vperm.xlu0 %442, %v405
        %v444 = vpop.permute.xlu0 %443
        %vm446 = vcmask 261120
        %v448 = vsel %vm446, %v390, 0
        %v451 = vsel %vm446, %v391, 0
        %v454 = vsel %vm446, %v392, 0
        %v457 = vsel %vm446, %v393, 0
        %v460 = vsel %vm446, %v394, 0
        %v463 = vsel %vm446, %v395, 0
        %v466 = vsel %vm446, %v396, 0
        %v469 = vsel %vm446, %v397, 0
        %v472 = vsel %vm446, %v358, 0
        %v475 = vsel %vm446, %v359, 0
        %v478 = vsel %vm446, %v360, 0
        %v481 = vsel %vm446, %v361, 0
        %v484 = vsel %vm446, %v362, 0
        %v487 = vsel %vm446, %v363, 0
        %v490 = vsel %vm446, %v364, 0
        %v493 = vsel %vm446, %v365, 0
        %v496 = vsel %vm446, %v366, 0
        %v499 = vsel %vm446, %v367, 0
        %v502 = vsel %vm446, %v368, 0
        %v505 = vsel %vm446, %v369, 0
        %v508 = vsel %vm446, %v370, 0
        %v511 = vsel %vm446, %v371, 0
        %v514 = vsel %vm446, %v372, 0
        %v517 = vsel %vm446, %v373, 0
        %v520 = vsel %vm446, %v374, 0
        %v523 = vsel %vm446, %v375, 0
        %v526 = vsel %vm446, %v376, 0
        %v529 = vsel %vm446, %v377, 0
        %v532 = vsel %vm446, %v378, 0
        %v535 = vsel %vm446, %v379, 0
        %v538 = vsel %vm446, %v380, 0
        %v541 = vsel %vm446, %v381, 0
        %v544 = vsel %vm446, %v382, 0
        %v547 = vsel %vm446, %v383, 0
        %v550 = vsel %vm446, %v384, 0
        %v553 = vsel %vm446, %v385, 0
        %v556 = vsel %vm446, %v386, 0
        %v559 = vsel %vm446, %v387, 0
        %v562 = vsel %vm446, %v388, 0
        %v565 = vsel %vm446, %v389, 0
        %567 = vmatpush.xpose.msra.mxu0 %v517
        %568 = vmatpush.xpose.msra.mxu0 %v514
        %569 = vmatpush.xpose.msra.mxu0 %v511
        %570 = vmatpush.xpose.msra.mxu0 %v508
        %571 = vmatpush.xpose.msra.mxu0 %v505
        %572 = vmatpush.xpose.msra.mxu0 %v502
        %573 = vmatpush.xpose.msra.mxu0 %v499
        %574 = vmatpush.xpose.msra.mxu0 %v496
        %575 = vmatpush.xpose.msra.mxu0 %v493
        %576 = vmatpush.xpose.msra.mxu0 %v490
        %577 = vmatpush.xpose.msra.mxu0 %v487
        %578 = vmatpush.xpose.msra.mxu0 %v484
        %579 = vmatpush.xpose.msra.mxu0 %v481
        %580 = vmatpush.xpose.msra.mxu0 %v478
        %581 = vmatpush.xpose.msra.mxu0 %v475
        %582 = vmatpush.xpose.msra.mxu0 %v472
        %583 = vmatmul.f32.gmra.mxu0 %v448
        %v584 = vpop.f32.mrf.mxu0
        %v585 = vadd.f32 %v409, %v584
        %586 = vmatmul.f32.gmra.mxu0 %v451
        %v587 = vpop.f32.mrf.mxu0
        %v588 = vadd.f32 %v414, %v587
        %589 = vmatmul.f32.gmra.mxu0 %v454
        %v590 = vpop.f32.mrf.mxu0
        %v591 = vadd.f32 %v419, %v590
        %592 = vmatmul.f32.gmra.mxu0 %v457
        %v593 = vpop.f32.mrf.mxu0
        %v594 = vadd.f32 %v424, %v593
        %595 = vmatmul.f32.gmra.mxu0 %v460
        %v596 = vpop.f32.mrf.mxu0
        %v597 = vadd.f32 %v429, %v596
        %598 = vmatmul.f32.gmra.mxu0 %v463
        %v599 = vpop.f32.mrf.mxu0
        %v600 = vadd.f32 %v434, %v599
        %601 = vmatmul.f32.gmra.mxu0 %v466
        %v602 = vpop.f32.mrf.mxu0
        %v603 = vadd.f32 %v439, %v602
        %604 = vmatmul.f32.gmra.mxu0 %v469
        %v605 = vpop.f32.mrf.mxu0
        %v606 = vadd.f32 %v444, %v605
        %607 = vdwg.mxu0
        %608 = vmatpush.xpose.msra.mxu0 %v565
        %609 = vmatpush.xpose.msra.mxu0 %v562
        %610 = vmatpush.xpose.msra.mxu0 %v559
        %611 = vmatpush.xpose.msra.mxu0 %v556
        %612 = vmatpush.xpose.msra.mxu0 %v553
        %613 = vmatpush.xpose.msra.mxu0 %v550
        %614 = vmatpush.xpose.msra.mxu0 %v547
        %615 = vmatpush.xpose.msra.mxu0 %v544
        %616 = vmatpush.xpose.msra.mxu0 %v541
        %617 = vmatpush.xpose.msra.mxu0 %v538
        %618 = vmatpush.xpose.msra.mxu0 %v535
        %619 = vmatpush.xpose.msra.mxu0 %v532
        %620 = vmatpush.xpose.msra.mxu0 %v529
        %621 = vmatpush.xpose.msra.mxu0 %v526
        %622 = vmatpush.xpose.msra.mxu0 %v523
        %623 = vmatpush.xpose.msra.mxu0 %v520
        %624 = vmatmul.f32.gmra.mxu0 %v448
        %v625 = vpop.f32.mrf.mxu0
        %v626 = vadd.f32 %v409, %v625
        %627 = vmatmul.f32.gmra.mxu0 %v451
        %v628 = vpop.f32.mrf.mxu0
        %v629 = vadd.f32 %v414, %v628
        %630 = vmatmul.f32.gmra.mxu0 %v454
        %v631 = vpop.f32.mrf.mxu0
        %v632 = vadd.f32 %v419, %v631
        %633 = vmatmul.f32.gmra.mxu0 %v457
        %v634 = vpop.f32.mrf.mxu0
        %v635 = vadd.f32 %v424, %v634
        %636 = vmatmul.f32.gmra.mxu0 %v460
        %v637 = vpop.f32.mrf.mxu0
        %v638 = vadd.f32 %v429, %v637
        %639 = vmatmul.f32.gmra.mxu0 %v463
        %v640 = vpop.f32.mrf.mxu0
        %v641 = vadd.f32 %v434, %v640
        %642 = vmatmul.f32.gmra.mxu0 %v466
        %v643 = vpop.f32.mrf.mxu0
        %v644 = vadd.f32 %v439, %v643
        %645 = vmatmul.f32.gmra.mxu0 %v469
        %v646 = vpop.f32.mrf.mxu0
        %v647 = vadd.f32 %v444, %v646
        %648 = vdwg.mxu0
        %v649 = vmax.f32 %v585, 0.0
        %v650 = vmax.f32 %v626, 0.0
        %v651 = vmax.f32 %v588, 0.0
        %v652 = vmax.f32 %v629, 0.0
        %v653 = vmax.f32 %v591, 0.0
        %v654 = vmax.f32 %v632, 0.0
        %v655 = vmax.f32 %v594, 0.0
        %v656 = vmax.f32 %v635, 0.0
        %v657 = vmax.f32 %v597, 0.0
        %v658 = vmax.f32 %v638, 0.0
        %v659 = vmax.f32 %v600, 0.0
        %v660 = vmax.f32 %v641, 0.0
        %v661 = vmax.f32 %v603, 0.0
        %v662 = vmax.f32 %v644, 0.0
        %v663 = vmax.f32 %v606, 0.0
        %v664 = vmax.f32 %v647, 0.0
        %v665 = vld [vmem:[%s3] sm:$0xff]
        %v666 = vld [vmem:[%s3 + $0x8] sm:$0xff]
        %v667 = vld [vmem:[%s3 + $0x10] sm:$0xff]
        %v668 = vld [vmem:[%s3 + $0x18] sm:$0xff]
        %v669 = vld [vmem:[%s3 + $0x20] sm:$0xff]
        %v670 = vld [vmem:[%s3 + $0x28] sm:$0xff]
        %v671 = vld [vmem:[%s3 + $0x30] sm:$0xff]
        %v672 = vld [vmem:[%s3 + $0x38] sm:$0xff]
        %v673 = vld [vmem:[%s4] sm:$0xff]
        %v674 = vld [vmem:[%s4 + $0x8] sm:$0xff]
        %v675 = vld [vmem:[%s4 + $0x10] sm:$0xff]
        %v676 = vld [vmem:[%s4 + $0x18] sm:$0xff]
        %v677 = vld [vmem:[%s4 + $0x20] sm:$0xff]
        %v678 = vld [vmem:[%s4 + $0x28] sm:$0xff]
        %v679 = vld [vmem:[%s4 + $0x30] sm:$0xff]
        %v680 = vld [vmem:[%s4 + $0x38] sm:$0xff]
        %682 = vset.pattern.permute.xlu0 0
        %683 = vperm.xlu0 %682, %v673
        %v684 = vpop.permute.xlu0 %683
        %687 = vset.pattern.permute.xlu0 0
        %688 = vperm.xlu0 %687, %v674
        %v689 = vpop.permute.xlu0 %688
        %692 = vset.pattern.permute.xlu0 0
        %693 = vperm.xlu0 %692, %v675
        %v694 = vpop.permute.xlu0 %693
        %697 = vset.pattern.permute.xlu0 0
        %698 = vperm.xlu0 %697, %v676
        %v699 = vpop.permute.xlu0 %698
        %702 = vset.pattern.permute.xlu0 0
        %703 = vperm.xlu0 %702, %v677
        %v704 = vpop.permute.xlu0 %703
        %707 = vset.pattern.permute.xlu0 0
        %708 = vperm.xlu0 %707, %v678
        %v709 = vpop.permute.xlu0 %708
        %712 = vset.pattern.permute.xlu0 0
        %713 = vperm.xlu0 %712, %v679
        %v714 = vpop.permute.xlu0 %713
        %717 = vset.pattern.permute.xlu0 0
        %718 = vperm.xlu0 %717, %v680
        %v719 = vpop.permute.xlu0 %718
        %vm721 = vcmask 523264
        %v723 = vsel %vm721, %v665, 0
        %v726 = vsel %vm721, %v666, 0
        %v729 = vsel %vm721, %v667, 0
        %v732 = vsel %vm721, %v668, 0
        %v735 = vsel %vm721, %v669, 0
        %v738 = vsel %vm721, %v670, 0
        %v741 = vsel %vm721, %v671, 0
        %v744 = vsel %vm721, %v672, 0
        %746 = vmatpush.msra.mxu0 0.0
        %747 = vmatpush.msra.mxu0 0.0
        %748 = vmatpush.msra.mxu0 0.0
        %749 = vmatpush.msra.mxu0 0.0
        %750 = vmatpush.msra.mxu0 0.0
        %751 = vmatpush.msra.mxu0 0.0
        %752 = vmatpush.msra.mxu0 0.0
        %753 = vmatpush.msra.mxu0 0.0
        %754 = vmatpush.msra.mxu0 %v663
        %755 = vmatpush.msra.mxu0 %v661
        %756 = vmatpush.msra.mxu0 %v659
        %757 = vmatpush.msra.mxu0 %v657
        %758 = vmatpush.msra.mxu0 %v655
        %759 = vmatpush.msra.mxu0 %v653
        %760 = vmatpush.msra.mxu0 %v651
        %761 = vmatpush.msra.mxu0 %v649
        %762 = vmatmul.f32.gmra.mxu0 %v723
        %v763 = vpop.f32.mrf.mxu0
        %v764 = vadd.f32 %v684, %v763
        %765 = vmatmul.f32.gmra.mxu0 %v726
        %v766 = vpop.f32.mrf.mxu0
        %v767 = vadd.f32 %v689, %v766
        %768 = vmatmul.f32.gmra.mxu0 %v729
        %v769 = vpop.f32.mrf.mxu0
        %v770 = vadd.f32 %v694, %v769
        %771 = vmatmul.f32.gmra.mxu0 %v732
        %v772 = vpop.f32.mrf.mxu0
        %v773 = vadd.f32 %v699, %v772
        %774 = vmatmul.f32.gmra.mxu0 %v735
        %v775 = vpop.f32.mrf.mxu0
        %v776 = vadd.f32 %v704, %v775
        %777 = vmatmul.f32.gmra.mxu0 %v738
        %v778 = vpop.f32.mrf.mxu0
        %v779 = vadd.f32 %v709, %v778
        %780 = vmatmul.f32.gmra.mxu0 %v741
        %v781 = vpop.f32.mrf.mxu0
        %v782 = vadd.f32 %v714, %v781
        %783 = vmatmul.f32.gmra.mxu0 %v744
        %v784 = vpop.f32.mrf.mxu0
        %v785 = vadd.f32 %v719, %v784
        %786 = vdwg.mxu0
        %787 = vmatpush.msra.mxu0 0.0
        %788 = vmatpush.msra.mxu0 0.0
        %789 = vmatpush.msra.mxu0 0.0
        %790 = vmatpush.msra.mxu0 0.0
        %791 = vmatpush.msra.mxu0 0.0
        %792 = vmatpush.msra.mxu0 0.0
        %793 = vmatpush.msra.mxu0 0.0
        %794 = vmatpush.msra.mxu0 0.0
        %795 = vmatpush.msra.mxu0 %v664
        %796 = vmatpush.msra.mxu0 %v662
        %797 = vmatpush.msra.mxu0 %v660
        %798 = vmatpush.msra.mxu0 %v658
        %799 = vmatpush.msra.mxu0 %v656
        %800 = vmatpush.msra.mxu0 %v654
        %801 = vmatpush.msra.mxu0 %v652
        %802 = vmatpush.msra.mxu0 %v650
        %803 = vmatmul.f32.gmra.mxu0 %v723
        %v804 = vpop.f32.mrf.mxu0
        %v805 = vadd.f32 %v684, %v804
        %806 = vmatmul.f32.gmra.mxu0 %v726
        %v807 = vpop.f32.mrf.mxu0
        %v808 = vadd.f32 %v689, %v807
        %809 = vmatmul.f32.gmra.mxu0 %v729
        %v810 = vpop.f32.mrf.mxu0
        %v811 = vadd.f32 %v694, %v810
        %812 = vmatmul.f32.gmra.mxu0 %v732
        %v813 = vpop.f32.mrf.mxu0
        %v814 = vadd.f32 %v699, %v813
        %815 = vmatmul.f32.gmra.mxu0 %v735
        %v816 = vpop.f32.mrf.mxu0
        %v817 = vadd.f32 %v704, %v816
        %818 = vmatmul.f32.gmra.mxu0 %v738
        %v819 = vpop.f32.mrf.mxu0
        %v820 = vadd.f32 %v709, %v819
        %821 = vmatmul.f32.gmra.mxu0 %v741
        %v822 = vpop.f32.mrf.mxu0
        %v823 = vadd.f32 %v714, %v822
        %824 = vmatmul.f32.gmra.mxu0 %v744
        %v825 = vpop.f32.mrf.mxu0
        %v826 = vadd.f32 %v719, %v825
        %827 = vdwg.mxu0
        %v828 = vmax.f32 %v764, 0.0
        %v829 = vmax.f32 %v805, 0.0
        %v830 = vmax.f32 %v767, 0.0
        %v831 = vmax.f32 %v808, 0.0
        %v832 = vmax.f32 %v770, 0.0
        %v833 = vmax.f32 %v811, 0.0
        %v834 = vmax.f32 %v773, 0.0
        %v835 = vmax.f32 %v814, 0.0
        %v836 = vmax.f32 %v776, 0.0
        %v837 = vmax.f32 %v817, 0.0
        %v838 = vmax.f32 %v779, 0.0
        %v839 = vmax.f32 %v820, 0.0
        %v840 = vmax.f32 %v782, 0.0
        %v841 = vmax.f32 %v823, 0.0
        %v842 = vmax.f32 %v785, 0.0
        %v843 = vmax.f32 %v826, 0.0
        %v844 = vld [vmem:[%s5] sm:$0xff]
        %v845 = vld [vmem:[%s5 + $0x8] sm:$0xff]
        %v846 = vld [vmem:[%s5 + $0x10] sm:$0xff]
        %v847 = vld [vmem:[%s5 + $0x18] sm:$0xff]
        %v848 = vld [vmem:[%s5 + $0x20] sm:$0xff]
        %v849 = vld [vmem:[%s5 + $0x28] sm:$0xff]
        %v850 = vld [vmem:[%s5 + $0x30] sm:$0xff]
        %v851 = vld [vmem:[%s5 + $0x38] sm:$0xff]
        %v852 = vld [vmem:[%s6] sm:$0xff]
        %v853 = vld [vmem:[%s6 + $0x8] sm:$0xff]
        %v854 = vld [vmem:[%s6 + $0x10] sm:$0xff]
        %v855 = vld [vmem:[%s6 + $0x18] sm:$0xff]
        %v856 = vld [vmem:[%s6 + $0x20] sm:$0xff]
        %v857 = vld [vmem:[%s6 + $0x28] sm:$0xff]
        %v858 = vld [vmem:[%s6 + $0x30] sm:$0xff]
        %v859 = vld [vmem:[%s6 + $0x38] sm:$0xff]
        %861 = vset.pattern.permute.xlu0 0
        %862 = vperm.xlu0 %861, %v852
        %v863 = vpop.permute.xlu0 %862
        %866 = vset.pattern.permute.xlu0 0
        %867 = vperm.xlu0 %866, %v853
        %v868 = vpop.permute.xlu0 %867
        %871 = vset.pattern.permute.xlu0 0
        %872 = vperm.xlu0 %871, %v854
        %v873 = vpop.permute.xlu0 %872
        %876 = vset.pattern.permute.xlu0 0
        %877 = vperm.xlu0 %876, %v855
        %v878 = vpop.permute.xlu0 %877
        %881 = vset.pattern.permute.xlu0 0
        %882 = vperm.xlu0 %881, %v856
        %v883 = vpop.permute.xlu0 %882
        %886 = vset.pattern.permute.xlu0 0
        %887 = vperm.xlu0 %886, %v857
        %v888 = vpop.permute.xlu0 %887
        %891 = vset.pattern.permute.xlu0 0
        %892 = vperm.xlu0 %891, %v858
        %v893 = vpop.permute.xlu0 %892
        %896 = vset.pattern.permute.xlu0 0
        %897 = vperm.xlu0 %896, %v859
        %v898 = vpop.permute.xlu0 %897
        %v901 = vsel %vm721, %v844, 0
        %v904 = vsel %vm721, %v845, 0
        %v907 = vsel %vm721, %v846, 0
        %v910 = vsel %vm721, %v847, 0
        %v913 = vsel %vm721, %v848, 0
        %v916 = vsel %vm721, %v849, 0
        %v919 = vsel %vm721, %v850, 0
        %v922 = vsel %vm721, %v851, 0
        %924 = vmatpush.msra.mxu0 0.0
        %925 = vmatpush.msra.mxu0 0.0
        %926 = vmatpush.msra.mxu0 0.0
        %927 = vmatpush.msra.mxu0 0.0
        %928 = vmatpush.msra.mxu0 0.0
        %929 = vmatpush.msra.mxu0 0.0
        %930 = vmatpush.msra.mxu0 0.0
        %931 = vmatpush.msra.mxu0 0.0
        %932 = vmatpush.msra.mxu0 %v842
        %933 = vmatpush.msra.mxu0 %v840
        %934 = vmatpush.msra.mxu0 %v838
        %935 = vmatpush.msra.mxu0 %v836
        %936 = vmatpush.msra.mxu0 %v834
        %937 = vmatpush.msra.mxu0 %v832
        %938 = vmatpush.msra.mxu0 %v830
        %939 = vmatpush.msra.mxu0 %v828
        %940 = vmatmul.f32.gmra.mxu0 %v901
        %v941 = vpop.f32.mrf.mxu0
        %v942 = vadd.f32 %v863, %v941
        %943 = vmatmul.f32.gmra.mxu0 %v904
        %v944 = vpop.f32.mrf.mxu0
        %v945 = vadd.f32 %v868, %v944
        %946 = vmatmul.f32.gmra.mxu0 %v907
        %v947 = vpop.f32.mrf.mxu0
        %v948 = vadd.f32 %v873, %v947
        %949 = vmatmul.f32.gmra.mxu0 %v910
        %v950 = vpop.f32.mrf.mxu0
        %v951 = vadd.f32 %v878, %v950
        %952 = vmatmul.f32.gmra.mxu0 %v913
        %v953 = vpop.f32.mrf.mxu0
        %v954 = vadd.f32 %v883, %v953
        %955 = vmatmul.f32.gmra.mxu0 %v916
        %v956 = vpop.f32.mrf.mxu0
        %v957 = vadd.f32 %v888, %v956
        %958 = vmatmul.f32.gmra.mxu0 %v919
        %v959 = vpop.f32.mrf.mxu0
        %v960 = vadd.f32 %v893, %v959
        %961 = vmatmul.f32.gmra.mxu0 %v922
        %v962 = vpop.f32.mrf.mxu0
        %v963 = vadd.f32 %v898, %v962
        %964 = vdwg.mxu0
        %965 = vmatpush.msra.mxu0 0.0
        %966 = vmatpush.msra.mxu0 0.0
        %967 = vmatpush.msra.mxu0 0.0
        %968 = vmatpush.msra.mxu0 0.0
        %969 = vmatpush.msra.mxu0 0.0
        %970 = vmatpush.msra.mxu0 0.0
        %971 = vmatpush.msra.mxu0 0.0
        %972 = vmatpush.msra.mxu0 0.0
        %973 = vmatpush.msra.mxu0 %v843
        %974 = vmatpush.msra.mxu0 %v841
        %975 = vmatpush.msra.mxu0 %v839
        %976 = vmatpush.msra.mxu0 %v837
        %977 = vmatpush.msra.mxu0 %v835
        %978 = vmatpush.msra.mxu0 %v833
        %979 = vmatpush.msra.mxu0 %v831
        %980 = vmatpush.msra.mxu0 %v829
        %981 = vmatmul.f32.gmra.mxu0 %v901
        %v982 = vpop.f32.mrf.mxu0
        %v983 = vadd.f32 %v863, %v982
        %984 = vmatmul.f32.gmra.mxu0 %v904
        %v985 = vpop.f32.mrf.mxu0
        %v986 = vadd.f32 %v868, %v985
        %987 = vmatmul.f32.gmra.mxu0 %v907
        %v988 = vpop.f32.mrf.mxu0
        %v989 = vadd.f32 %v873, %v988
        %990 = vmatmul.f32.gmra.mxu0 %v910
        %v991 = vpop.f32.mrf.mxu0
        %v992 = vadd.f32 %v878, %v991
        %993 = vmatmul.f32.gmra.mxu0 %v913
        %v994 = vpop.f32.mrf.mxu0
        %v995 = vadd.f32 %v883, %v994
        %996 = vmatmul.f32.gmra.mxu0 %v916
        %v997 = vpop.f32.mrf.mxu0
        %v998 = vadd.f32 %v888, %v997
        %999 = vmatmul.f32.gmra.mxu0 %v919
        %v1000 = vpop.f32.mrf.mxu0
        %v1001 = vadd.f32 %v893, %v1000
        %1002 = vmatmul.f32.gmra.mxu0 %v922
        %v1003 = vpop.f32.mrf.mxu0
        %v1004 = vadd.f32 %v898, %v1003
        %1005 = vdwg.mxu0
        %v1006 = vmax.f32 %v942, 0.0
        %v1007 = vmax.f32 %v983, 0.0
        %v1008 = vmax.f32 %v945, 0.0
        %v1009 = vmax.f32 %v986, 0.0
        %v1010 = vmax.f32 %v948, 0.0
        %v1011 = vmax.f32 %v989, 0.0
        %v1012 = vmax.f32 %v951, 0.0
        %v1013 = vmax.f32 %v992, 0.0
        %v1014 = vmax.f32 %v954, 0.0
        %v1015 = vmax.f32 %v995, 0.0
        %v1016 = vmax.f32 %v957, 0.0
        %v1017 = vmax.f32 %v998, 0.0
        %v1018 = vmax.f32 %v960, 0.0
        %v1019 = vmax.f32 %v1001, 0.0
        %v1020 = vmax.f32 %v963, 0.0
        %v1021 = vmax.f32 %v1004, 0.0
        %v1022 = vld [vmem:[%s7] sm:$0xff]
        %v1023 = vld [vmem:[%s8] sm:$0xff]
        %1025 = vset.pattern.permute.xlu0 0
        %1026 = vperm.xlu0 %1025, %v1023
        %v1027 = vpop.permute.xlu0 %1026
        %v1030 = vsel %vm721, %v1022, 0
        %1032 = vmatpush.msra.mxu0 0.0
        %1033 = vmatpush.msra.mxu0 0.0
        %1034 = vmatpush.msra.mxu0 0.0
        %1035 = vmatpush.msra.mxu0 0.0
        %1036 = vmatpush.msra.mxu0 0.0
        %1037 = vmatpush.msra.mxu0 0.0
        %1038 = vmatpush.msra.mxu0 0.0
        %1039 = vmatpush.msra.mxu0 0.0
        %1040 = vmatpush.msra.mxu0 %v1020
        %1041 = vmatpush.msra.mxu0 %v1018
        %1042 = vmatpush.msra.mxu0 %v1016
        %1043 = vmatpush.msra.mxu0 %v1014
        %1044 = vmatpush.msra.mxu0 %v1012
        %1045 = vmatpush.msra.mxu0 %v1010
        %1046 = vmatpush.msra.mxu0 %v1008
        %1047 = vmatpush.msra.mxu0 %v1006
        %1048 = vmatmul.f32.gmra.mxu0 %v1030
        %v1049 = vpop.f32.mrf.mxu0
        %v1050 = vadd.f32 %v1027, %v1049
        %1051 = vdwg.mxu0
        %1052 = vmatpush.msra.mxu0 0.0
        %1053 = vmatpush.msra.mxu0 0.0
        %1054 = vmatpush.msra.mxu0 0.0
        %1055 = vmatpush.msra.mxu0 0.0
        %1056 = vmatpush.msra.mxu0 0.0
        %1057 = vmatpush.msra.mxu0 0.0
        %1058 = vmatpush.msra.mxu0 0.0
        %1059 = vmatpush.msra.mxu0 0.0
        %1060 = vmatpush.msra.mxu0 %v1021
        %1061 = vmatpush.msra.mxu0 %v1019
        %1062 = vmatpush.msra.mxu0 %v1017
        %1063 = vmatpush.msra.mxu0 %v1015
        %1064 = vmatpush.msra.mxu0 %v1013
        %1065 = vmatpush.msra.mxu0 %v1011
        %1066 = vmatpush.msra.mxu0 %v1009
        %1067 = vmatpush.msra.mxu0 %v1007
        %1068 = vmatmul.f32.gmra.mxu0 %v1030
        %v1069 = vpop.f32.mrf.mxu0
        %v1070 = vadd.f32 %v1027, %v1069
        %1071 = vdwg.mxu0
        %v1072 = vtanh.pop %v1050
        %v1073 = vtanh.pop %v1070
        %1074 = vst [vmem:[%s338] sm:$0xff] %v1072
        %1075 = vst [vmem:[%s338 + $0x8] sm:$0xff] %v1073
        %s1076 = sand.u32 %s225, 1
        %s1077 = scalar_lea.sflag [#allocation3], %s1076
        %s1078 = sand.u32 %s225, 1
        %s1079 = smul.addr %s1078, 16
        %s1080 = scalar_lea.vmem [#allocation2], %s1079
        // Predicated region
        $region57: #{grader_fc_forward.1} parent=55 // pred_check
          %p1081 = pneg %p235
        $region58: #{grader_fc_forward.1} parent=55 // pred_check_branch
          %1083 = sbr.rel (%p1081) target = $region60
        $region59: #{grader_fc_forward.1} parent=55 // pred_region
          %s1084 = smul.u32 2, %s23
          %s1085 = ssub.s32 3, %s1084
          %p1086 = scmp.lt.s32.totalorder %s1085, 2
          %s1087 = scalar_select %p1086, %s1085, 2
          %s1088 = smul.u32 8, %s1087
          %s1089 = ssub.s32 16, %s1088
          %s1090 = sshll.u32 %s1089, 4
          %1091 = vsyncadd %s1077, %s1090
          %p1092 = scmp.ne.s32.totalorder 0, %s1088
          %s1093 = smul.addr %s1084, 8
          %s1094 = scalar_lea.hbm %s9, %s1093
          %s1095 = smul.u32 %s1087, 8
          %s1096 = sshll.u32 %s1095, 4
          %s1097 = sshll.u32 %s1080, 4
          %s1098 = int_to_ptr.vmem [resolvable:$true] %s1097
          %s1099 = sshll.u32 %s1094, 4
          %s1100 = int_to_ptr.hbm [resolvable:$true] %s1099
          %1102 = dma.vmem_to_hbm [thread:$0]  (%p1092), %s1098, %s1096, %s1100, %s1077
        $region60: #{grader_fc_forward.1} parent=55 // pred_fallthru
          _
      $region56: #{grader_fc_forward.1} parent=5 // pred_fallthru
        _
      %p1103 = scmp.le.s32.totalorder 2, %s18
      // Predicated region
      $region61: #{grader_fc_forward.1} parent=5 // pred_check
        %p1104 = pneg %p1103
      $region62: #{grader_fc_forward.1} parent=5 // pred_check_branch
        %1106 = sbr.rel (%p1104) target = $region64
      $region63: #{grader_fc_forward.1} parent=5 // pred_region
        %s1107 = ssub.s32 %s18, 2
        // Predicated region
        $region65: #{grader_fc_forward.1} parent=63 // pred_check
          %p1108 = pneg %p241
        $region66: #{grader_fc_forward.1} parent=63 // pred_check_branch
          %1110 = sbr.rel (%p1108) target = $region68
        $region67: #{grader_fc_forward.1} parent=63 // pred_region
          %s1111 = sand.u32 %s226, 1
          %s1112 = scalar_lea.sflag [#allocation3], %s1111
          %s1113 = sand.u32 %s226, 1
          %s1114 = smul.addr %s1113, 16
          %s1115 = scalar_lea.vmem [#allocation2], %s1114
          %1117 = dma.done %s1112, 256
        $region68: #{grader_fc_forward.1} parent=63 // pred_fallthru
          _
      $region64: #{grader_fc_forward.1} parent=5 // pred_fallthru
        _
    $region6: #{grader_fc_forward.1} parent=1 // loop_footer
      %s22 = sadd.s32 1, %s18
    $region7: #{grader_fc_forward.1} parent=1 // loop_footer_branch
      %17 = sbr.rel target = $region3
    $region8: #{grader_fc_forward.1} parent=1 // loop_exit
      _
    %1118 = vsyncpa [#allocation3], 1
    %s1119 = scalar_lea.sflag [#allocation3], 1
    %1120 = vsyncpa %s1119, 1

</llo_original>
